<compile_context>
chip_gen: v5e
topology: v5e:2x2
jax: 0.10.0
libtpu: 0.0.40
codegen_flags: <defaults>
</compile_context>

<pallas_src>
from functools import partial

import numpy as np
import jax
import jax.numpy as jnp
from jax.experimental import pallas as pl
from jax.experimental.pallas import tpu as pltpu


def self_attention_kernel(x_ref, xc_ref, wf_ref, wgh_ref, wv_ref, gamma_ref,
                          out_ref, gx_sc, hx_sc):
    # x_ref   : (TQ, C)          f32  query pixels (row-major spatial), residual
    # xc_ref  : (HW, C)          bf16 4 corner blocks of every 2x2 window,
    #                                 stacked along rows (HW/4 rows per corner)
    # wf_ref  : (C, C//8)        bf16
    # wgh_ref : (C, C//8+C//2)   bf16 (wg ++ wh on the output dim)
    # wv_ref  : (C//2, C)        bf16
    # gamma   : (1, 1)           f32  SMEM scalar
    # gx_sc   : (HW/4, C//8)     bf16 VMEM scratch (pooled g-projection)
    # hx_sc   : (HW/4, C//2)     bf16 VMEM scratch (pooled h-projection)
    c8 = gx_sc.shape[1]

    # ---- pooled side: compute once per batch element, reuse across q tiles ----
    @pl.when(pl.program_id(1) == 0)
    def _():
        xc = xc_ref[...]                                        # (4*HWp, C) bf16
        proj = jnp.dot(xc, wgh_ref[...],
                       preferred_element_type=jnp.float32)      # (4*HWp, 5C/8)
        hwp = xc.shape[0] // 4
        # maxpool(conv1x1(x)) == elementwise max of the 4 corner projections
        p01 = jnp.maximum(proj[0 * hwp:1 * hwp, :], proj[1 * hwp:2 * hwp, :])
        p23 = jnp.maximum(proj[2 * hwp:3 * hwp, :], proj[3 * hwp:4 * hwp, :])
        pooled = jnp.maximum(p01, p23)                          # (HWp, 5C/8) f32
        gx_sc[...] = pooled[:, :c8].astype(gx_sc.dtype)
        hx_sc[...] = pooled[:, c8:].astype(hx_sc.dtype)

    # ---- query side (every grid step) ----
    x = x_ref[...]                                              # (TQ, C) f32
    xb = x.astype(jnp.bfloat16)
    fx = jnp.dot(xb, wf_ref[...],
                 preferred_element_type=jnp.float32)            # (TQ, C//8)

    # s = fx @ gx^T without materializing the transpose
    s = jax.lax.dot_general(
        fx.astype(jnp.bfloat16), gx_sc[...],
        dimension_numbers=(((1,), (1,)), ((), ())),
        preferred_element_type=jnp.float32)                     # (TQ, HWp)

    # softmax over the fully-resident pooled axis; normalization deferred
    s_max = jnp.max(s, axis=-1, keepdims=True)
    e = jnp.exp(s - s_max)                                      # (TQ, HWp) f32
    denom = jnp.sum(e, axis=-1, keepdims=True)                  # (TQ, 1)

    o_mid = jnp.dot(e.astype(jnp.bfloat16), hx_sc[...],
                    preferred_element_type=jnp.float32)         # (TQ, C//2)
    # fold gamma and the deferred 1/sum into one per-row scale
    gamma = gamma_ref[0, 0]
    o_mid = o_mid * (gamma * pl.reciprocal(denom, approx=True))
    o = jnp.dot(o_mid.astype(jnp.bfloat16), wv_ref[...],
                preferred_element_type=jnp.float32)             # (TQ, C)

    out_ref[...] = (o + x).astype(out_ref.dtype)


@partial(jax.jit, static_argnames=("tq",))
def self_attention_pallas(x, wf2d, wg2d, wh2d, wv2d, gamma, *, tq=None):
    """x: (B, C, H, W) float32.  w*2d: PyTorch-style (Cout, Cin) 1x1-conv weights."""
    B, C, H, W = x.shape
    assert H % 2 == 0 and W % 2 == 0 and C % 8 == 0
    HW = H * W
    HWp = HW // 4
    C8, C2 = C // 8, C // 2

    if tq is None:
        tq = HW
        while tq > 512 and tq % 2 == 0:
            tq //= 2
    assert HW % tq == 0 and (tq % 8 == 0 or tq == HW)
    nq = HW // tq

    # ---- layout plumbing (plain JAX; pure reshape/transpose, no compute) ----
    x_nhwc = jnp.transpose(x, (0, 2, 3, 1))                     # (B, H, W, C)
    x_std = x_nhwc.reshape(B, HW, C)                            # row-major spatial
    xw = x_nhwc.reshape(B, H // 2, 2, W // 2, 2, C)
    corners = jnp.stack(
        [xw[:, :, 0, :, 0, :], xw[:, :, 0, :, 1, :],
         xw[:, :, 1, :, 0, :], xw[:, :, 1, :, 1, :]],
        axis=1)                                                 # (B, 4, H/2, W/2, C)
    corners = corners.reshape(B, HW, C).astype(jnp.bfloat16)    # 4 corner blocks

    wf_m = wf2d.T.astype(jnp.bfloat16)                          # (C,  C//8)
    wgh_m = jnp.concatenate([wg2d.T, wh2d.T], axis=1).astype(jnp.bfloat16)
    wv_m = wv2d.T.astype(jnp.bfloat16)                          # (C//2, C)
    gamma_arr = jnp.asarray(gamma, dtype=jnp.float32).reshape(1, 1)

    # VMEM budget estimate for the compiler (double-buffered tiles + residents).
    est = 2 * 2 * tq * C * 4                                    # x / out tiles
    est += 2 * HW * C * 2                                       # stacked corners
    est += 2 * 2 * (C * C8 + C * (C8 + C2) + C2 * C)            # bf16 weights
    est += HWp * (C8 + C2) * 2                                  # scratch
    est += 4 * tq * HWp * 4 + 4 * tq * C * 4                    # s/e + temporaries
    est += 4 * HW * (C8 + C2) * 4                               # pooled-side proj
    vmem_limit = int(max(16 << 20, min(48 << 20, 2 * est)))

    out = pl.pallas_call(
        self_attention_kernel,
        out_shape=jax.ShapeDtypeStruct((B, HW, C), x.dtype),
        grid=(B, nq),
        in_specs=[
            pl.BlockSpec((None, tq, C), lambda b, q: (b, q, 0)),   # x query tile
            pl.BlockSpec((None, HW, C), lambda b, q: (b, 0, 0)),   # corners (per b)
            pl.BlockSpec(wf_m.shape, lambda b, q: (0, 0)),
            pl.BlockSpec(wgh_m.shape, lambda b, q: (0, 0)),
            pl.BlockSpec(wv_m.shape, lambda b, q: (0, 0)),
            pl.BlockSpec(memory_space=pltpu.MemorySpace.SMEM),     # gamma
        ],
        out_specs=pl.BlockSpec((None, tq, C), lambda b, q: (b, q, 0)),
        scratch_shapes=[
            pltpu.VMEM((HWp, C8), jnp.bfloat16),                   # gx (pooled)
            pltpu.VMEM((HWp, C2), jnp.bfloat16),                   # hx (pooled)
        ],
        input_output_aliases={0: 0},                               # x_std -> out
        compiler_params=pltpu.CompilerParams(
            dimension_semantics=("parallel", "arbitrary"),
            vmem_limit_bytes=vmem_limit),
    )(x_std, corners, wf_m, wgh_m, wv_m, gamma_arr)

    return out.reshape(B, H, W, C).transpose(0, 3, 1, 2)


# ---------- pure-JAX f32 reference (mirrors the PyTorch forward) ----------
def _maxpool2(x):  # (B, C, H, W), kernel=stride=2
    B, C, H, W = x.shape
    return x.reshape(B, C, H // 2, 2, W // 2, 2).max(axis=(3, 5))


def _conv1x1(x, w2d):  # x: (B, Cin, H, W), w2d: (Cout, Cin)
    return jnp.einsum('bchw,oc->bohw', x, w2d)


def self_attention_reference(x, wf2d, wg2d, wh2d, wv2d, gamma):
    B, C, H, W = x.shape
    fx = _conv1x1(x, wf2d)
    gx = _maxpool2(_conv1x1(x, wg2d))
    hx = _maxpool2(_conv1x1(x, wh2d))
    fx = fx.reshape(B, C // 8, H * W).transpose(0, 2, 1)        # (B, HW, C//8)
    gx = gx.reshape(B, C // 8, H * W // 4)                      # (B, C//8, HW/4)
    s = jnp.einsum('bnc,bcm->bnm', fx, gx)                      # (B, HW, HW/4)
    beta = jax.nn.softmax(s, axis=-1).transpose(0, 2, 1)        # (B, HW/4, HW)
    hx = hx.reshape(B, C // 2, H * W // 4)
    o_mid = jnp.einsum('bcm,bmn->bcn', hx, beta).reshape(B, C // 2, H, W)
    o = _conv1x1(o_mid, wv2d)
    return gamma * o + x


def _make_sn_weight(key, cout, cin):
    w = np.asarray(jax.random.normal(key, (cout, cin), dtype=jnp.float32)) * 0.1
    sigma = np.linalg.svd(w, compute_uv=False)[0]   # exact spectral norm
    return jnp.asarray(w / sigma, dtype=jnp.float32)


if __name__ == "__main__":
    B, C, H, W = 2, 64, 16, 16     # channel must be divisible by 8
    key = jax.random.PRNGKey(0)
    kx, kf, kg, kh, kv = jax.random.split(key, 5)

    x = jax.random.normal(kx, (B, C, H, W), dtype=jnp.float32)
    wf = _make_sn_weight(kf, C // 8, C)
    wg = _make_sn_weight(kg, C // 8, C)
    wh = _make_sn_weight(kh, C // 2, C)
    wv = _make_sn_weight(kv, C, C // 2)

    # Module-init forward (gamma = 0.0 -> y == x; residual path stays f32).
    y0 = self_attention_pallas(x, wf, wg, wh, wv, 0.0, tq=64)
    jax.block_until_ready(y0)
    assert jnp.allclose(y0, x, atol=1e-5), "gamma=0 path must return x"

    # Full attention path vs the f32 reference.  The kernel uses bf16 matmul
    # inputs with f32 accumulation, so tolerance is loosened accordingly.
    gamma1 = 0.7
    y1 = self_attention_pallas(x, wf, wg, wh, wv, gamma1, tq=64)
    ref1 = self_attention_reference(x, wf, wg, wh, wv, gamma1)
    jax.block_until_ready((y1, ref1))
    max_err = float(jnp.max(jnp.abs(y1 - ref1)))
    assert jnp.allclose(y1, ref1, atol=5e-2, rtol=5e-2), max_err

    print("KERNEL_OK")
</pallas_src>

<mosaic_0001>
module attributes {stable_mosaic.version = 11 : i64} {
  func.func @self_attention_kernel(%arg0: i32, %arg1: i32, %arg2: memref<1x64x64xf32, #tpu.memory_space<vmem>>, %arg3: memref<1x256x64xbf16, #tpu.memory_space<vmem>>, %arg4: memref<64x8xbf16, #tpu.memory_space<vmem>>, %arg5: memref<64x40xbf16, #tpu.memory_space<vmem>>, %arg6: memref<32x64xbf16, #tpu.memory_space<vmem>>, %arg7: memref<1x1xf32, #tpu.memory_space<smem>>, %arg8: memref<1x64x64xf32, #tpu.memory_space<vmem>>, %arg9: memref<64x8xbf16, #tpu.memory_space<vmem>>, %arg10: memref<64x32xbf16, #tpu.memory_space<vmem>>) attributes {dimension_semantics = [#tpu.dimension_semantics<parallel>, #tpu.dimension_semantics<arbitrary>], iteration_bounds = array<i64: 2, 4>, scalar_prefetch = 0 : i64, scratch_operands = 2 : i64, tpu.core_type = #tpu.core_type<tc>, window_params = [{transform_indices = @transform_0, window_bounds = array<i64: 1, 64, 64>}, {transform_indices = @transform_1, window_bounds = array<i64: 1, 256, 64>}, {pipeline_mode = #tpu.pipeline_mode<synchronous>, transform_indices = @transform_2, window_bounds = array<i64: 64, 8>}, {pipeline_mode = #tpu.pipeline_mode<synchronous>, transform_indices = @transform_3, window_bounds = array<i64: 64, 40>}, {pipeline_mode = #tpu.pipeline_mode<synchronous>, transform_indices = @transform_4, window_bounds = array<i64: 32, 64>}, {transform_indices = @transform_5, window_bounds = array<i64: 1, 1>}, {transform_indices = @transform_6, window_bounds = array<i64: 1, 64, 64>}]} {
    %c0_i32 = arith.constant 0 : i32
    %0 = arith.cmpi eq, %arg1, %c0_i32 : i32
    %1 = arith.extui %0 : i1 to i32
    %c0_i32_0 = arith.constant 0 : i32
    %2 = arith.cmpi ne, %1, %c0_i32_0 : i32
    scf.if %2 {
      %c0_21 = arith.constant 0 : index
      %c0_22 = arith.constant 0 : index
      %c0_23 = arith.constant 0 : index
      %34 = vector.load %arg3[%c0_21, %c0_22, %c0_23] : memref<1x256x64xbf16, #tpu.memory_space<vmem>>, vector<1x256x64xbf16>
      %35 = vector.shape_cast %34 : vector<1x256x64xbf16> to vector<256x64xbf16>
      %c0_24 = arith.constant 0 : index
      %c0_25 = arith.constant 0 : index
      %36 = vector.load %arg5[%c0_24, %c0_25] : memref<64x40xbf16, #tpu.memory_space<vmem>>, vector<64x40xbf16>
      %cst_26 = arith.constant dense<0.000000e+00> : vector<256x40xf32>
      %37 = tpu.matmul %35, %36, %cst_26 {dimension_numbers = #tpu.dot_dimension_numbers<[1], [0], [0], [1], [0, 0, 1, 1], [], []>} : vector<256x64xbf16>, vector<64x40xbf16>, vector<256x40xf32> -> vector<256x40xf32>
      %38 = vector.extract_strided_slice %37 {offsets = [0, 0], sizes = [64, 40], strides = [1, 1]} : vector<256x40xf32> to vector<64x40xf32>
      %39 = vector.extract_strided_slice %37 {offsets = [64, 0], sizes = [64, 40], strides = [1, 1]} : vector<256x40xf32> to vector<64x40xf32>
      %40 = arith.maximumf %38, %39 : vector<64x40xf32>
      %41 = vector.extract_strided_slice %37 {offsets = [128, 0], sizes = [64, 40], strides = [1, 1]} : vector<256x40xf32> to vector<64x40xf32>
      %42 = vector.extract_strided_slice %37 {offsets = [192, 0], sizes = [64, 40], strides = [1, 1]} : vector<256x40xf32> to vector<64x40xf32>
      %43 = arith.maximumf %41, %42 : vector<64x40xf32>
      %44 = arith.maximumf %40, %43 : vector<64x40xf32>
      %45 = vector.extract_strided_slice %44 {offsets = [0, 0], sizes = [64, 8], strides = [1, 1]} : vector<64x40xf32> to vector<64x8xf32>
      %46 = arith.truncf %45 : vector<64x8xf32> to vector<64x8xbf16>
      %c0_27 = arith.constant 0 : index
      %c0_28 = arith.constant 0 : index
      %47 = vector.load %arg9[%c0_27, %c0_28] : memref<64x8xbf16, #tpu.memory_space<vmem>>, vector<64x8xbf16>
      tpu.vector_store %arg9[%c0_27, %c0_28], %46 {strides = array<i32>} : memref<64x8xbf16, #tpu.memory_space<vmem>>, vector<64x8xbf16>,
      %48 = vector.extract_strided_slice %44 {offsets = [0, 8], sizes = [64, 32], strides = [1, 1]} : vector<64x40xf32> to vector<64x32xf32>
      %49 = arith.truncf %48 : vector<64x32xf32> to vector<64x32xbf16>
      %c0_29 = arith.constant 0 : index
      %c0_30 = arith.constant 0 : index
      %50 = vector.load %arg10[%c0_29, %c0_30] : memref<64x32xbf16, #tpu.memory_space<vmem>>, vector<64x32xbf16>
      tpu.vector_store %arg10[%c0_29, %c0_30], %49 {strides = array<i32>} : memref<64x32xbf16, #tpu.memory_space<vmem>>, vector<64x32xbf16>,
    } else {
    }
    %c0 = arith.constant 0 : index
    %c0_1 = arith.constant 0 : index
    %c0_2 = arith.constant 0 : index
    %3 = vector.load %arg2[%c0, %c0_1, %c0_2] : memref<1x64x64xf32, #tpu.memory_space<vmem>>, vector<1x64x64xf32>
    %4 = vector.shape_cast %3 : vector<1x64x64xf32> to vector<64x64xf32>
    %5 = arith.truncf %4 : vector<64x64xf32> to vector<64x64xbf16>
    %c0_3 = arith.constant 0 : index
    %c0_4 = arith.constant 0 : index
    %6 = vector.load %arg4[%c0_3, %c0_4] : memref<64x8xbf16, #tpu.memory_space<vmem>>, vector<64x8xbf16>
    %cst = arith.constant dense<0.000000e+00> : vector<64x8xf32>
    %7 = tpu.matmul %5, %6, %cst {dimension_numbers = #tpu.dot_dimension_numbers<[1], [0], [0], [1], [0, 0, 1, 1], [], []>} : vector<64x64xbf16>, vector<64x8xbf16>, vector<64x8xf32> -> vector<64x8xf32>
    %8 = arith.truncf %7 : vector<64x8xf32> to vector<64x8xbf16>
    %c0_5 = arith.constant 0 : index
    %c0_6 = arith.constant 0 : index
    %9 = vector.load %arg9[%c0_5, %c0_6] : memref<64x8xbf16, #tpu.memory_space<vmem>>, vector<64x8xbf16>
    %cst_7 = arith.constant dense<0.000000e+00> : vector<64x64xf32>
    %10 = tpu.matmul %8, %9, %cst_7 {dimension_numbers = #tpu.dot_dimension_numbers<[1], [1], [0], [0], [0, 0, 1, 0], [], []>} : vector<64x8xbf16>, vector<64x8xbf16>, vector<64x64xf32> -> vector<64x64xf32>
    %cst_8 = arith.constant dense<0xFF800000> : vector<64xf32>
    %11 = vector.multi_reduction <maximumf>, %10, %cst_8 [1] : vector<64x64xf32> to vector<64xf32>
    %12 = vector.shape_cast %11 : vector<64xf32> to vector<64x1xf32>
    %13 = vector.broadcast %12 : vector<64x1xf32> to vector<64x64xf32>
    %14 = arith.subf %10, %13 : vector<64x64xf32>
    %15 = math.exp %14 : vector<64x64xf32>
    %cst_9 = arith.constant dense<0.000000e+00> : vector<64xf32>
    %16 = vector.multi_reduction <add>, %15, %cst_9 [1] : vector<64x64xf32> to vector<64xf32>
    %17 = vector.shape_cast %16 : vector<64xf32> to vector<64x1xf32>
    %18 = arith.truncf %15 : vector<64x64xf32> to vector<64x64xbf16>
    %c0_10 = arith.constant 0 : index
    %c0_11 = arith.constant 0 : index
    %19 = vector.load %arg10[%c0_10, %c0_11] : memref<64x32xbf16, #tpu.memory_space<vmem>>, vector<64x32xbf16>
    %cst_12 = arith.constant dense<0.000000e+00> : vector<64x32xf32>
    %20 = tpu.matmul %18, %19, %cst_12 {dimension_numbers = #tpu.dot_dimension_numbers<[1], [0], [0], [1], [0, 0, 1, 1], [], []>} : vector<64x64xbf16>, vector<64x32xbf16>, vector<64x32xf32> -> vector<64x32xf32>
    %c0_13 = arith.constant 0 : index
    %c0_14 = arith.constant 0 : index
    %21 = memref.load %arg7[%c0_13, %c0_14] : memref<1x1xf32, #tpu.memory_space<smem>>
    %22 = tpu.reciprocal %17 {approx = true} : vector<64x1xf32> -> vector<64x1xf32>
    %23 = vector.broadcast %21 : f32 to vector<64x1xf32>
    %24 = arith.mulf %23, %22 : vector<64x1xf32>
    %25 = vector.broadcast %24 : vector<64x1xf32> to vector<64x32xf32>
    %26 = arith.mulf %20, %25 : vector<64x32xf32>
    %27 = arith.truncf %26 : vector<64x32xf32> to vector<64x32xbf16>
    %c0_15 = arith.constant 0 : index
    %c0_16 = arith.constant 0 : index
    %28 = vector.load %arg6[%c0_15, %c0_16] : memref<32x64xbf16, #tpu.memory_space<vmem>>, vector<32x64xbf16>
    %cst_17 = arith.constant dense<0.000000e+00> : vector<64x64xf32>
    %29 = tpu.matmul %27, %28, %cst_17 {dimension_numbers = #tpu.dot_dimension_numbers<[1], [0], [0], [1], [0, 0, 1, 1], [], []>} : vector<64x32xbf16>, vector<32x64xbf16>, vector<64x64xf32> -> vector<64x64xf32>
    %30 = arith.addf %29, %4 : vector<64x64xf32>
    %c0_18 = arith.constant 0 : index
    %c0_19 = arith.constant 0 : index
    %c0_20 = arith.constant 0 : index
    %31 = vector.load %arg8[%c0_18, %c0_19, %c0_20] : memref<1x64x64xf32, #tpu.memory_space<vmem>>, vector<1x64x64xf32>
    %32 = vector.shape_cast %31 : vector<1x64x64xf32> to vector<64x64xf32>
    %33 = vector.shape_cast %30 : vector<64x64xf32> to vector<1x64x64xf32>
    tpu.vector_store %arg8[%c0_18, %c0_19, %c0_20], %33 {strides = array<i32>} : memref<1x64x64xf32, #tpu.memory_space<vmem>>, vector<1x64x64xf32>,
    return
  }
  func.func @transform_0(%arg0: i32, %arg1: i32) -> (i32, i32, i32) {
    %c0_i32 = arith.constant 0 : i32
    %c0_i32_0 = arith.constant 0 : i32
    return %arg0, %arg1, %c0_i32 : i32, i32, i32
  }
  func.func @transform_1(%arg0: i32, %arg1: i32) -> (i32, i32, i32) {
    %c0_i32 = arith.constant 0 : i32
    %c0_i32_0 = arith.constant 0 : i32
    %c0_i32_1 = arith.constant 0 : i32
    return %arg0, %c0_i32, %c0_i32_0 : i32, i32, i32
  }
  func.func @transform_2(%arg0: i32, %arg1: i32) -> (i32, i32) {
    %c0_i32 = arith.constant 0 : i32
    %c0_i32_0 = arith.constant 0 : i32
    %c0_i32_1 = arith.constant 0 : i32
    return %c0_i32, %c0_i32_0 : i32, i32
  }
  func.func @transform_3(%arg0: i32, %arg1: i32) -> (i32, i32) {
    %c0_i32 = arith.constant 0 : i32
    %c0_i32_0 = arith.constant 0 : i32
    %c0_i32_1 = arith.constant 0 : i32
    return %c0_i32, %c0_i32_0 : i32, i32
  }
  func.func @transform_4(%arg0: i32, %arg1: i32) -> (i32, i32) {
    %c0_i32 = arith.constant 0 : i32
    %c0_i32_0 = arith.constant 0 : i32
    %c0_i32_1 = arith.constant 0 : i32
    return %c0_i32, %c0_i32_0 : i32, i32
  }
  func.func @transform_5(%arg0: i32, %arg1: i32) -> (i32, i32) {
    %c0_i32 = arith.constant 0 : i32
    %c0_i32_0 = arith.constant 0 : i32
    %c0_i32_1 = arith.constant 0 : i32
    return %c0_i32, %c0_i32_0 : i32, i32
  }
  func.func @transform_6(%arg0: i32, %arg1: i32) -> (i32, i32, i32) {
    %c0_i32 = arith.constant 0 : i32
    %c0_i32_0 = arith.constant 0 : i32
    return %arg0, %arg1, %c0_i32 : i32, i32, i32
  }
}

</mosaic_0001>

<llo_original>
// kernel: self_attention_pallas.1
$region0: #{self_attention_pallas.1}
  #allocation0 [shape = 'u32[]', space=smem, size = 0x4, offset = 0x4, fixed_abs, tag = 'smem constant byte address 0x4 - core index']
  #allocation1 [shape = 'u32[72,128]{1,0:T(1,128)}', space=vmem, size = 0x9000, scoped, tag = 'internal scratch']
  #allocation2 [shape = 'bf16[64,8]{1,0:T(8,128)(2,1)}', space=vmem, size = 0x4000, scoped, tag = 'scratch operand']
  #allocation3 [shape = 'bf16[64,32]{1,0:T(8,128)(2,1)}', space=vmem, size = 0x4000, scoped, tag = 'scratch operand']
  #allocation4 [shape = 'f32[1,1]{1,0:T(1,128)S(6)}', space=smem, size = 0x200, scoped, tag = 'scoped memory for self_attention_pallas.1']
  %s0 = inlined_call_operand.vmem [shape: f32[2,256,64], index: 0, kind: input, shape index: {}, may-alias: {0,6}]
  %s1 = inlined_call_operand.vmem [shape: bf16[2,256,64], index: 1, kind: input, shape index: {}]
  %s2 = inlined_call_operand.vmem [shape: bf16[64,8], index: 2, kind: input, shape index: {}]
  %s3 = inlined_call_operand.vmem [shape: bf16[64,40], index: 3, kind: input, shape index: {}]
  %s4 = inlined_call_operand.vmem [shape: bf16[32,64], index: 4, kind: input, shape index: {}]
  %s5 = inlined_call_operand.<no memory space> [shape: f32[1,1], index: 5, kind: input, shape index: {}]
  %s6 = inlined_call_operand.vmem [shape: f32[2,256,64], index: 6, kind: output, shape index: {}, may-alias: {0,6}]
  %s7 = sld [smem:[#allocation0]]
  $region61: #{self_attention_pallas.1} parent=0
    _
  %s9 = ssub.s32 1, %s7
  %s10 = scalar_select 0, %s9, %s7
  %11 = sst [smem:[#allocation4]] %s5
  loop: start=0, step=1, limit=10
  $region2: #{self_attention_pallas.1} parent=0 // loop_pre_header
    _
  $region3: #{self_attention_pallas.1} parent=0 // loop_header
    %s13 = sphi 0, %s17
    %p14 = scmp.ge.s32.totalorder %s13, 10
    %s20 = sphi 0, %s32
    %s21 = sphi 0, %s28
    %s22 = sphi 0, %s20
    %s23 = sphi 0, %s21
    %s24 = sphi 0, %s22
    %s25 = sphi 0, %s23
    %s37 = sphi 0, %s39
    %s40 = sphi 0, %s37
    %s41 = sphi 0, %s40
    %s57 = sphi 0, %s41
    %s63 = sphi 0, %s65
    %s66 = sphi 0, %s63
    %s67 = sphi 0, %s66
    %s83 = sphi 0, %s67
    %s87 = sphi 0, %s87
    %s89 = sphi 0, %s87
    %s90 = sphi 0, %s89
    %s104 = sphi 0, %s90
    %s108 = sphi 0, %s108
    %s110 = sphi 0, %s108
    %s111 = sphi 0, %s110
    %s125 = sphi 0, %s111
    %s129 = sphi 0, %s129
    %s131 = sphi 0, %s129
    %s132 = sphi 0, %s131
    %s146 = sphi 0, %s132
    %s150 = sphi 0, %s150
    %s152 = sphi 0, %s150
    %s153 = sphi 0, %s152
    %s167 = sphi 0, %s153
    %s175 = sphi 0, %s177
    %s178 = sphi 0, %s175
    %s179 = sphi 0, %s178
    %s195 = sphi 0, %s179
  $region4: #{self_attention_pallas.1} parent=0 // loop_header_branch
    %16 = sbr.rel (%p14) target = $region8
  $region5: #{self_attention_pallas.1} parent=0 // loop_body
    %s18 = ssub.s32 %s13, 1
    %s19 = ssub.s32 %s13, 2
    %s26 = sadd.s32 1, %s21
    %p27 = scmp.ge.s32.totalorder %s26, 4
    %s28 = scalar_select %p27, 0, %s26
    %s29 = sadd.s32 1, %s20
    %s30 = scalar_select %p27, %s29, %s20
    %p31 = scmp.ge.s32.totalorder %s30, 2
    %s32 = scalar_select %p31, 0, %s30
    %s33 = ssub.s32 %s20, %s32
    %s34 = ssub.s32 %s21, %s28
    %s35 = sor.u32 %s33, %s34
    %p36 = scmp.eq.s32.totalorder %s35, 0
    %s38 = sadd.s32 %s37, 1
    %s39 = scalar_select %p36, %s37, %s38
    %p42 = pneg %p36
    %p43 = scmp.eq.s32.totalorder %s13, 7
    %p44 = por %p42, %p43
    %p45 = scmp.ne.s32.totalorder %s37, %s40
    %p46 = scmp.eq.s32.totalorder %s13, 0
    %p47 = por %p45, %p46
    %p48 = scmp.ne.s32.totalorder %s37, %s40
    %p49 = scmp.eq.s32.totalorder %s18, 7
    %p50 = por %p48, %p49
    %p51 = scmp.ne.s32.totalorder %s40, %s41
    %p52 = scmp.eq.s32.totalorder %s18, 0
    %p53 = por %p51, %p52
    %p54 = scmp.ne.s32.totalorder %s40, %s41
    %p55 = scmp.eq.s32.totalorder %s19, 7
    %p56 = por %p54, %p55
    %p58 = scmp.ne.s32.totalorder %s41, %s57
    %p59 = scmp.eq.s32.totalorder %s19, 0
    %p60 = por %p58, %p59
    %s61 = ssub.s32 %s20, %s32
    %p62 = scmp.eq.s32.totalorder %s61, 0
    %s64 = sadd.s32 %s63, 1
    %s65 = scalar_select %p62, %s63, %s64
    %p68 = pneg %p62
    %p69 = scmp.eq.s32.totalorder %s13, 7
    %p70 = por %p68, %p69
    %p71 = scmp.ne.s32.totalorder %s63, %s66
    %p72 = scmp.eq.s32.totalorder %s13, 0
    %p73 = por %p71, %p72
    %p74 = scmp.ne.s32.totalorder %s63, %s66
    %p75 = scmp.eq.s32.totalorder %s18, 7
    %p76 = por %p74, %p75
    %p77 = scmp.ne.s32.totalorder %s66, %s67
    %p78 = scmp.eq.s32.totalorder %s18, 0
    %p79 = por %p77, %p78
    %p80 = scmp.ne.s32.totalorder %s66, %s67
    %p81 = scmp.eq.s32.totalorder %s19, 7
    %p82 = por %p80, %p81
    %p84 = scmp.ne.s32.totalorder %s67, %s83
    %p85 = scmp.eq.s32.totalorder %s19, 0
    %p86 = por %p84, %p85
    %s88 = sadd.s32 %s87, 1
    %p91 = scmp.eq.s32.totalorder %s13, 7
    %p92 = scmp.ne.s32.totalorder %s87, %s89
    %p93 = scmp.eq.s32.totalorder %s13, 0
    %p94 = por %p92, %p93
    %p95 = scmp.ne.s32.totalorder %s87, %s89
    %p96 = scmp.eq.s32.totalorder %s18, 7
    %p97 = por %p95, %p96
    %p98 = scmp.ne.s32.totalorder %s89, %s90
    %p99 = scmp.eq.s32.totalorder %s18, 0
    %p100 = por %p98, %p99
    %p101 = scmp.ne.s32.totalorder %s89, %s90
    %p102 = scmp.eq.s32.totalorder %s19, 7
    %p103 = por %p101, %p102
    %p105 = scmp.ne.s32.totalorder %s90, %s104
    %p106 = scmp.eq.s32.totalorder %s19, 0
    %p107 = por %p105, %p106
    %s109 = sadd.s32 %s108, 1
    %p112 = scmp.eq.s32.totalorder %s13, 7
    %p113 = scmp.ne.s32.totalorder %s108, %s110
    %p114 = scmp.eq.s32.totalorder %s13, 0
    %p115 = por %p113, %p114
    %p116 = scmp.ne.s32.totalorder %s108, %s110
    %p117 = scmp.eq.s32.totalorder %s18, 7
    %p118 = por %p116, %p117
    %p119 = scmp.ne.s32.totalorder %s110, %s111
    %p120 = scmp.eq.s32.totalorder %s18, 0
    %p121 = por %p119, %p120
    %p122 = scmp.ne.s32.totalorder %s110, %s111
    %p123 = scmp.eq.s32.totalorder %s19, 7
    %p124 = por %p122, %p123
    %p126 = scmp.ne.s32.totalorder %s111, %s125
    %p127 = scmp.eq.s32.totalorder %s19, 0
    %p128 = por %p126, %p127
    %s130 = sadd.s32 %s129, 1
    %p133 = scmp.eq.s32.totalorder %s13, 7
    %p134 = scmp.ne.s32.totalorder %s129, %s131
    %p135 = scmp.eq.s32.totalorder %s13, 0
    %p136 = por %p134, %p135
    %p137 = scmp.ne.s32.totalorder %s129, %s131
    %p138 = scmp.eq.s32.totalorder %s18, 7
    %p139 = por %p137, %p138
    %p140 = scmp.ne.s32.totalorder %s131, %s132
    %p141 = scmp.eq.s32.totalorder %s18, 0
    %p142 = por %p140, %p141
    %p143 = scmp.ne.s32.totalorder %s131, %s132
    %p144 = scmp.eq.s32.totalorder %s19, 7
    %p145 = por %p143, %p144
    %p147 = scmp.ne.s32.totalorder %s132, %s146
    %p148 = scmp.eq.s32.totalorder %s19, 0
    %p149 = por %p147, %p148
    %s151 = sadd.s32 %s150, 1
    %p154 = scmp.eq.s32.totalorder %s13, 7
    %p155 = scmp.ne.s32.totalorder %s150, %s152
    %p156 = scmp.eq.s32.totalorder %s13, 0
    %p157 = por %p155, %p156
    %p158 = scmp.ne.s32.totalorder %s150, %s152
    %p159 = scmp.eq.s32.totalorder %s18, 7
    %p160 = por %p158, %p159
    %p161 = scmp.ne.s32.totalorder %s152, %s153
    %p162 = scmp.eq.s32.totalorder %s18, 0
    %p163 = por %p161, %p162
    %p164 = scmp.ne.s32.totalorder %s152, %s153
    %p165 = scmp.eq.s32.totalorder %s19, 7
    %p166 = por %p164, %p165
    %p168 = scmp.ne.s32.totalorder %s153, %s167
    %p169 = scmp.eq.s32.totalorder %s19, 0
    %p170 = por %p168, %p169
    %s171 = ssub.s32 %s20, %s32
    %s172 = ssub.s32 %s21, %s28
    %s173 = sor.u32 %s171, %s172
    %p174 = scmp.eq.s32.totalorder %s173, 0
    %s176 = sadd.s32 %s175, 1
    %s177 = scalar_select %p174, %s175, %s176
    %p180 = pneg %p174
    %p181 = scmp.eq.s32.totalorder %s13, 7
    %p182 = por %p180, %p181
    %p183 = scmp.ne.s32.totalorder %s175, %s178
    %p184 = scmp.eq.s32.totalorder %s13, 0
    %p185 = por %p183, %p184
    %p186 = scmp.ne.s32.totalorder %s175, %s178
    %p187 = scmp.eq.s32.totalorder %s18, 7
    %p188 = por %p186, %p187
    %p189 = scmp.ne.s32.totalorder %s178, %s179
    %p190 = scmp.eq.s32.totalorder %s18, 0
    %p191 = por %p189, %p190
    %p192 = scmp.ne.s32.totalorder %s178, %s179
    %p193 = scmp.eq.s32.totalorder %s19, 7
    %p194 = por %p192, %p193
    %p196 = scmp.ne.s32.totalorder %s179, %s195
    %p197 = scmp.eq.s32.totalorder %s19, 0
    %p198 = por %p196, %p197
    %p199 = scmp.le.s32.totalorder 1, %s13
    %p200 = scmp.lt.s32.totalorder %s13, 9
    %p201 = pnand %p199, %p200
    %p202 = pneg %p201
    // Predicated region
    $region9: #{self_attention_pallas.1} parent=5 // pred_check
      _
    $region10: #{self_attention_pallas.1} parent=5 // pred_check_branch
      %204 = sbr.rel (%p201) target = $region12
    $region11: #{self_attention_pallas.1} parent=5 // pred_region
      %s205 = ssub.s32 %s13, 1
      // Predicated region
      $region13: #{self_attention_pallas.1} parent=11 // pred_check
        %p206 = pneg %p100
      $region14: #{self_attention_pallas.1} parent=11 // pred_check_branch
        %208 = sbr.rel (%p206) target = $region16
      $region15: #{self_attention_pallas.1} parent=11 // pred_region
        _
      $region16: #{self_attention_pallas.1} parent=11 // pred_fallthru
        _
      // Predicated region
      $region17: #{self_attention_pallas.1} parent=11 // pred_check
        %p209 = pneg %p121
      $region18: #{self_attention_pallas.1} parent=11 // pred_check_branch
        %211 = sbr.rel (%p209) target = $region20
      $region19: #{self_attention_pallas.1} parent=11 // pred_region
        _
      $region20: #{self_attention_pallas.1} parent=11 // pred_fallthru
        _
      // Predicated region
      $region21: #{self_attention_pallas.1} parent=11 // pred_check
        %p212 = pneg %p142
      $region22: #{self_attention_pallas.1} parent=11 // pred_check_branch
        %214 = sbr.rel (%p212) target = $region24
      $region23: #{self_attention_pallas.1} parent=11 // pred_region
        _
      $region24: #{self_attention_pallas.1} parent=11 // pred_fallthru
        _
      // Predicated region
      $region25: #{self_attention_pallas.1} parent=11 // pred_check
        %p215 = pneg %p163
      $region26: #{self_attention_pallas.1} parent=11 // pred_check_branch
        %217 = sbr.rel (%p215) target = $region28
      $region27: #{self_attention_pallas.1} parent=11 // pred_region
        _
      $region28: #{self_attention_pallas.1} parent=11 // pred_fallthru
        _
    $region12: #{self_attention_pallas.1} parent=5 // pred_fallthru
      _
    %p218 = scmp.lt.s32.totalorder %s13, 8
    // Predicated region
    $region29: #{self_attention_pallas.1} parent=5 // pred_check
      %p219 = pneg %p218
    $region30: #{self_attention_pallas.1} parent=5 // pred_check_branch
      %221 = sbr.rel (%p219) target = $region32
    $region31: #{self_attention_pallas.1} parent=5 // pred_region
      // Predicated region
      $region33: #{self_attention_pallas.1} parent=31 // pred_check
        %p222 = pneg %p47
      $region34: #{self_attention_pallas.1} parent=31 // pred_check_branch
        %224 = sbr.rel (%p222) target = $region36
      $region35: #{self_attention_pallas.1} parent=31 // pred_region
        %s225 = smul.u32 8, %s21
        %p226 = scmp.lt.s32.totalorder %s20, 1
        %s227 = scalar_select %p226, %s20, 1
        %p228 = scmp.lt.s32.totalorder %s225, 31
        %s229 = scalar_select %p228, %s225, 31
        %s230 = smul.addr %s227, 32
        %s231 = sadd.s32 %s229, %s230
        %s232 = smul.addr %s231, 8
        %s233 = scalar_lea.vmem %s0, %s232
        %s234 = smul.u32 8, %s21
      $region36: #{self_attention_pallas.1} parent=31 // pred_fallthru
        _
      // Predicated region
      $region37: #{self_attention_pallas.1} parent=31 // pred_check
        %p235 = pneg %p73
      $region38: #{self_attention_pallas.1} parent=31 // pred_check_branch
        %237 = sbr.rel (%p235) target = $region40
      $region39: #{self_attention_pallas.1} parent=31 // pred_region
        %p238 = scmp.lt.s32.totalorder %s20, 1
        %s239 = scalar_select %p238, %s20, 1
        %s240 = smul.addr %s239, 32
        %s241 = smul.addr %s240, 4
        %s242 = scalar_lea.vmem %s1, %s241
      $region40: #{self_attention_pallas.1} parent=31 // pred_fallthru
        _
    $region32: #{self_attention_pallas.1} parent=5 // pred_fallthru
      _
    %p243 = scmp.le.s32.totalorder 1, %s13
    %p244 = scmp.lt.s32.totalorder %s13, 9
    %p245 = pnand %p243, %p244
    %p246 = pneg %p245
    // Predicated region
    $region41: #{self_attention_pallas.1} parent=5 // pred_check
      _
    $region42: #{self_attention_pallas.1} parent=5 // pred_check_branch
      %248 = sbr.rel (%p245) target = $region44
    $region43: #{self_attention_pallas.1} parent=5 // pred_region
      %s249 = ssub.s32 %s13, 1
      %s250 = smul.u32 8, %s23
      %p251 = scmp.lt.s32.totalorder %s22, 1
      %s252 = scalar_select %p251, %s22, 1
      %p253 = scmp.lt.s32.totalorder %s250, 31
      %s254 = scalar_select %p253, %s250, 31
      %s255 = smul.addr %s252, 32
      %s256 = sadd.s32 %s254, %s255
      %s257 = smul.addr %s256, 8
      %s258 = scalar_lea.vmem %s0, %s257
      %p259 = pneg %p53
      %p260 = pneg %p50
      %p261 = scmp.lt.s32.totalorder %s22, 1
      %s262 = scalar_select %p261, %s22, 1
      %s263 = smul.addr %s262, 32
      %s264 = smul.addr %s263, 4
      %s265 = scalar_lea.vmem %s1, %s264
      %p266 = pneg %p79
      %p267 = pneg %p76
      %p268 = pneg %p100
      %p269 = pneg %p97
      %p270 = pneg %p121
      %p271 = pneg %p118
      %p272 = pneg %p142
      %p273 = pneg %p139
      %p274 = pneg %p163
      %p275 = pneg %p160
      %p276 = pneg %p191
      %p277 = pneg %p188
      %s278 = smul.u32 8, %s23
      %p279 = scmp.lt.s32.totalorder %s22, 1
      %s280 = scalar_select %p279, %s22, 1
      %p281 = scmp.lt.s32.totalorder %s278, 31
      %s282 = scalar_select %p281, %s278, 31
      %s283 = smul.addr %s280, 32
      %s284 = sadd.s32 %s282, %s283
      %s285 = smul.addr %s284, 8
      %s286 = scalar_lea.vmem %s6, %s285
      %s287 = smul.u32 8, %s23
      %p288 = scmp.lt.s32.totalorder %s22, 1
      %s289 = scalar_select %p288, %s22, 1
      %p290 = scmp.lt.s32.totalorder %s287, 31
      %s291 = scalar_select %p290, %s287, 31
      %s292 = smul.addr %s289, 32
      %s293 = sadd.s32 %s291, %s292
      %s294 = smul.addr %s293, 8
      %s295 = scalar_lea.vmem %s0, %s294
      %s296 = smul.u32 8, %s23
      %p297 = scmp.lt.s32.totalorder %s22, 1
      %s298 = scalar_select %p297, %s22, 1
      %s299 = smul.addr %s298, 32
      %s300 = smul.addr %s299, 4
      %s301 = scalar_lea.vmem %s1, %s300
      %s302 = smul.u32 8, %s23
      %p303 = scmp.lt.s32.totalorder %s22, 1
      %s304 = scalar_select %p303, %s22, 1
      %p305 = scmp.lt.s32.totalorder %s302, 31
      %s306 = scalar_select %p305, %s302, 31
      %s307 = smul.addr %s304, 32
      %s308 = sadd.s32 %s306, %s307
      %s309 = smul.addr %s308, 8
      %s310 = scalar_lea.vmem %s6, %s309
      %s311 = smul.u32 8, %s23
      %p313 = scmp.eq.s32.totalorder %s23, 0
      // Predicated region
      $region45: #{self_attention_pallas.1} parent=43 // pred_check
        %p314 = pneg %p313
      $region46: #{self_attention_pallas.1} parent=43 // pred_check_branch
        %316 = sbr.rel (%p314) target = $region48
      $region47: #{self_attention_pallas.1} parent=43 // pred_region
        %v317 = vld [vmem:[%s301] sm:$0xf]
        %v318 = vld [vmem:[%s301 + $0x4] sm:$0xf]
        %v319 = vld [vmem:[%s301 + $0x8] sm:$0xf]
        %v320 = vld [vmem:[%s301 + $0xc] sm:$0xf]
        %v321 = vld [vmem:[%s301 + $0x10] sm:$0xf]
        %v322 = vld [vmem:[%s301 + $0x14] sm:$0xf]
        %v323 = vld [vmem:[%s301 + $0x18] sm:$0xf]
        %v324 = vld [vmem:[%s301 + $0x1c] sm:$0xf]
        %v325 = vld [vmem:[%s301 + $0x20] sm:$0xf]
        %v326 = vld [vmem:[%s301 + $0x24] sm:$0xf]
        %v327 = vld [vmem:[%s301 + $0x28] sm:$0xf]
        %v328 = vld [vmem:[%s301 + $0x2c] sm:$0xf]
        %v329 = vld [vmem:[%s301 + $0x30] sm:$0xf]
        %v330 = vld [vmem:[%s301 + $0x34] sm:$0xf]
        %v331 = vld [vmem:[%s301 + $0x38] sm:$0xf]
        %v332 = vld [vmem:[%s301 + $0x3c] sm:$0xf]
        %v333 = vld [vmem:[%s301 + $0x40] sm:$0xf]
        %v334 = vld [vmem:[%s301 + $0x44] sm:$0xf]
        %v335 = vld [vmem:[%s301 + $0x48] sm:$0xf]
        %v336 = vld [vmem:[%s301 + $0x4c] sm:$0xf]
        %v337 = vld [vmem:[%s301 + $0x50] sm:$0xf]
        %v338 = vld [vmem:[%s301 + $0x54] sm:$0xf]
        %v339 = vld [vmem:[%s301 + $0x58] sm:$0xf]
        %v340 = vld [vmem:[%s301 + $0x5c] sm:$0xf]
        %v341 = vld [vmem:[%s301 + $0x60] sm:$0xf]
        %v342 = vld [vmem:[%s301 + $0x64] sm:$0xf]
        %v343 = vld [vmem:[%s301 + $0x68] sm:$0xf]
        %v344 = vld [vmem:[%s301 + $0x6c] sm:$0xf]
        %v345 = vld [vmem:[%s301 + $0x70] sm:$0xf]
        %v346 = vld [vmem:[%s301 + $0x74] sm:$0xf]
        %v347 = vld [vmem:[%s301 + $0x78] sm:$0xf]
        %v348 = vld [vmem:[%s301 + $0x7c] sm:$0xf]
        %v349 = vld [vmem:[%s3] sm:$0xf]
        %v350 = vld [vmem:[%s3 + $0x4] sm:$0xf]
        %v351 = vld [vmem:[%s3 + $0x8] sm:$0xf]
        %v352 = vld [vmem:[%s3 + $0xc] sm:$0xf]
        %v353 = vld [vmem:[%s3 + $0x10] sm:$0xf]
        %v354 = vld [vmem:[%s3 + $0x14] sm:$0xf]
        %v355 = vld [vmem:[%s3 + $0x18] sm:$0xf]
        %v356 = vld [vmem:[%s3 + $0x1c] sm:$0xf]
        %v389 = vunpack.c.l.b16 %v317
        %v390 = vunpack.c.l.b16 %v318
        %v391 = vunpack.c.l.b16 %v319
        %v392 = vunpack.c.l.b16 %v320
        %v393 = vunpack.c.l.b16 %v321
        %v394 = vunpack.c.l.b16 %v322
        %v395 = vunpack.c.l.b16 %v323
        %v396 = vunpack.c.l.b16 %v324
        %v397 = vunpack.c.l.b16 %v325
        %v398 = vunpack.c.l.b16 %v326
        %v399 = vunpack.c.l.b16 %v327
        %v400 = vunpack.c.l.b16 %v328
        %v401 = vunpack.c.l.b16 %v329
        %v402 = vunpack.c.l.b16 %v330
        %v403 = vunpack.c.l.b16 %v331
        %v404 = vunpack.c.l.b16 %v332
        %v405 = vunpack.c.l.b16 %v333
        %v406 = vunpack.c.l.b16 %v334
        %v407 = vunpack.c.l.b16 %v335
        %v408 = vunpack.c.l.b16 %v336
        %v409 = vunpack.c.l.b16 %v337
        %v410 = vunpack.c.l.b16 %v338
        %v411 = vunpack.c.l.b16 %v339
        %v412 = vunpack.c.l.b16 %v340
        %v413 = vunpack.c.l.b16 %v341
        %v414 = vunpack.c.l.b16 %v342
        %v415 = vunpack.c.l.b16 %v343
        %v416 = vunpack.c.l.b16 %v344
        %v417 = vunpack.c.l.b16 %v345
        %v418 = vunpack.c.l.b16 %v346
        %v419 = vunpack.c.l.b16 %v347
        %v420 = vunpack.c.l.b16 %v348
        %v421 = vpack.c.b16 %v390, %v389
        %v422 = vpack.c.b16 %v392, %v391
        %v423 = vpack.c.b16 %v394, %v393
        %v424 = vpack.c.b16 %v396, %v395
        %v425 = vpack.c.b16 %v398, %v397
        %v426 = vpack.c.b16 %v400, %v399
        %v427 = vpack.c.b16 %v402, %v401
        %v428 = vpack.c.b16 %v404, %v403
        %v429 = vpack.c.b16 %v406, %v405
        %v430 = vpack.c.b16 %v408, %v407
        %v431 = vpack.c.b16 %v410, %v409
        %v432 = vpack.c.b16 %v412, %v411
        %v433 = vpack.c.b16 %v414, %v413
        %v434 = vpack.c.b16 %v416, %v415
        %v435 = vpack.c.b16 %v418, %v417
        %v436 = vpack.c.b16 %v420, %v419
        %v445 = vunpack.c.l.b16 %v349
        %v446 = vunpack.c.l.b16 %v350
        %v447 = vunpack.c.l.b16 %v351
        %v448 = vunpack.c.l.b16 %v352
        %v449 = vunpack.c.l.b16 %v353
        %v450 = vunpack.c.l.b16 %v354
        %v451 = vunpack.c.l.b16 %v355
        %v452 = vunpack.c.l.b16 %v356
        %v453 = vpack.c.b16 %v446, %v445
        %v454 = vpack.c.b16 %v448, %v447
        %v455 = vpack.c.b16 %v450, %v449
        %v456 = vpack.c.b16 %v452, %v451
        %vm461 = vcmask 523264
        %v463 = vsel %vm461, %v421, 0
        %v466 = vsel %vm461, %v422, 0
        %v469 = vsel %vm461, %v423, 0
        %v472 = vsel %vm461, %v424, 0
        %v475 = vsel %vm461, %v425, 0
        %v478 = vsel %vm461, %v426, 0
        %v481 = vsel %vm461, %v427, 0
        %v484 = vsel %vm461, %v428, 0
        %v487 = vsel %vm461, %v429, 0
        %v490 = vsel %vm461, %v430, 0
        %v493 = vsel %vm461, %v431, 0
        %v496 = vsel %vm461, %v432, 0
        %v499 = vsel %vm461, %v433, 0
        %v502 = vsel %vm461, %v434, 0
        %v505 = vsel %vm461, %v435, 0
        %v508 = vsel %vm461, %v436, 0
        %510 = vmatpush.bf16.msra.mxu0 0
        %511 = vmatpush.bf16.msra.mxu0 0
        %512 = vmatpush.bf16.msra.mxu0 0
        %513 = vmatpush.bf16.msra.mxu0 0
        %514 = vmatpush.bf16.msra.mxu0 %v456
        %515 = vmatpush.bf16.msra.mxu0 %v455
        %516 = vmatpush.bf16.msra.mxu0 %v454
        %517 = vmatpush.bf16.msra.mxu0 %v453
        %518 = vmatmul.bf16.gmra.mxu0 %v463
        %v519 = vpop.f32.mrf.mxu0
        %v520 = vadd.f32 0.0, %v519
        %v521 = vpop.f32.mrf.mxu0
        %v522 = vadd.f32 0.0, %v521
        %523 = vmatmul.bf16.gmra.mxu0 %v466
        %v524 = vpop.f32.mrf.mxu0
        %v525 = vadd.f32 0.0, %v524
        %v526 = vpop.f32.mrf.mxu0
        %v527 = vadd.f32 0.0, %v526
        %528 = vmatmul.bf16.gmra.mxu0 %v469
        %v529 = vpop.f32.mrf.mxu0
        %v530 = vadd.f32 0.0, %v529
        %v531 = vpop.f32.mrf.mxu0
        %v532 = vadd.f32 0.0, %v531
        %533 = vmatmul.bf16.gmra.mxu0 %v472
        %v534 = vpop.f32.mrf.mxu0
        %v535 = vadd.f32 0.0, %v534
        %v536 = vpop.f32.mrf.mxu0
        %v537 = vadd.f32 0.0, %v536
        %538 = vmatmul.bf16.gmra.mxu0 %v475
        %v539 = vpop.f32.mrf.mxu0
        %v540 = vadd.f32 0.0, %v539
        %v541 = vpop.f32.mrf.mxu0
        %v542 = vadd.f32 0.0, %v541
        %543 = vmatmul.bf16.gmra.mxu0 %v478
        %v544 = vpop.f32.mrf.mxu0
        %v545 = vadd.f32 0.0, %v544
        %v546 = vpop.f32.mrf.mxu0
        %v547 = vadd.f32 0.0, %v546
        %548 = vmatmul.bf16.gmra.mxu0 %v481
        %v549 = vpop.f32.mrf.mxu0
        %v550 = vadd.f32 0.0, %v549
        %v551 = vpop.f32.mrf.mxu0
        %v552 = vadd.f32 0.0, %v551
        %553 = vmatmul.bf16.gmra.mxu0 %v484
        %v554 = vpop.f32.mrf.mxu0
        %v555 = vadd.f32 0.0, %v554
        %v556 = vpop.f32.mrf.mxu0
        %v557 = vadd.f32 0.0, %v556
        %558 = vmatmul.bf16.gmra.mxu0 %v487
        %v559 = vpop.f32.mrf.mxu0
        %v560 = vadd.f32 0.0, %v559
        %v561 = vpop.f32.mrf.mxu0
        %v562 = vadd.f32 0.0, %v561
        %563 = vmatmul.bf16.gmra.mxu0 %v490
        %v564 = vpop.f32.mrf.mxu0
        %v565 = vadd.f32 0.0, %v564
        %v566 = vpop.f32.mrf.mxu0
        %v567 = vadd.f32 0.0, %v566
        %568 = vmatmul.bf16.gmra.mxu0 %v493
        %v569 = vpop.f32.mrf.mxu0
        %v570 = vadd.f32 0.0, %v569
        %v571 = vpop.f32.mrf.mxu0
        %v572 = vadd.f32 0.0, %v571
        %573 = vmatmul.bf16.gmra.mxu0 %v496
        %v574 = vpop.f32.mrf.mxu0
        %v575 = vadd.f32 0.0, %v574
        %v576 = vpop.f32.mrf.mxu0
        %v577 = vadd.f32 0.0, %v576
        %578 = vmatmul.bf16.gmra.mxu0 %v499
        %v579 = vpop.f32.mrf.mxu0
        %v580 = vadd.f32 0.0, %v579
        %v581 = vpop.f32.mrf.mxu0
        %v582 = vadd.f32 0.0, %v581
        %583 = vmatmul.bf16.gmra.mxu0 %v502
        %v584 = vpop.f32.mrf.mxu0
        %v585 = vadd.f32 0.0, %v584
        %v586 = vpop.f32.mrf.mxu0
        %v587 = vadd.f32 0.0, %v586
        %588 = vmatmul.bf16.gmra.mxu0 %v505
        %v589 = vpop.f32.mrf.mxu0
        %v590 = vadd.f32 0.0, %v589
        %v591 = vpop.f32.mrf.mxu0
        %v592 = vadd.f32 0.0, %v591
        %593 = vmatmul.bf16.gmra.mxu0 %v508
        %v594 = vpop.f32.mrf.mxu0
        %v595 = vadd.f32 0.0, %v594
        %v596 = vpop.f32.mrf.mxu0
        %v597 = vadd.f32 0.0, %v596
        %598 = vdwg.mxu0
        %v599 = vmax.f32 %v520, %v540
        %v600 = vmax.f32 %v522, %v542
        %v601 = vmax.f32 %v525, %v545
        %v602 = vmax.f32 %v527, %v547
        %v603 = vmax.f32 %v530, %v550
        %v604 = vmax.f32 %v532, %v552
        %v605 = vmax.f32 %v535, %v555
        %v606 = vmax.f32 %v537, %v557
        %v607 = vmax.f32 %v560, %v580
        %v608 = vmax.f32 %v562, %v582
        %v609 = vmax.f32 %v565, %v585
        %v610 = vmax.f32 %v567, %v587
        %v611 = vmax.f32 %v570, %v590
        %v612 = vmax.f32 %v572, %v592
        %v613 = vmax.f32 %v575, %v595
        %v614 = vmax.f32 %v577, %v597
        %v615 = vmax.f32 %v599, %v607
        %v616 = vmax.f32 %v600, %v608
        %v617 = vmax.f32 %v601, %v609
        %v618 = vmax.f32 %v602, %v610
        %v619 = vmax.f32 %v603, %v611
        %v620 = vmax.f32 %v604, %v612
        %v621 = vmax.f32 %v605, %v613
        %v622 = vmax.f32 %v606, %v614
        %v623 = vpack.c.bf16 %v615, %v615
        %v624 = vpack.c.bf16 %v616, %v616
        %v625 = vpack.c.bf16 %v617, %v617
        %v626 = vpack.c.bf16 %v618, %v618
        %v627 = vpack.c.bf16 %v619, %v619
        %v628 = vpack.c.bf16 %v620, %v620
        %v629 = vpack.c.bf16 %v621, %v621
        %v630 = vpack.c.bf16 %v622, %v622
        %vm631 = vcmask 60416
        %632 = vst.msk [vmem:[#allocation2] sm:$0xf] %vm631, %v623
        %633 = vst.msk [vmem:[#allocation2 + $0x4] sm:$0xf] %vm631, %v624
        %634 = vst.msk [vmem:[#allocation2 + $0x8] sm:$0xf] %vm631, %v625
        %635 = vst.msk [vmem:[#allocation2 + $0xc] sm:$0xf] %vm631, %v626
        %636 = vst.msk [vmem:[#allocation2 + $0x10] sm:$0xf] %vm631, %v627
        %637 = vst.msk [vmem:[#allocation2 + $0x14] sm:$0xf] %vm631, %v628
        %638 = vst.msk [vmem:[#allocation2 + $0x18] sm:$0xf] %vm631, %v629
        %639 = vst.msk [vmem:[#allocation2 + $0x1c] sm:$0xf] %vm631, %v630
        %648 = vrot.lane.b32.xlu0 %v623, 120
        %v649 = vpop.permute.xlu0 %648
        %650 = vrot.lane.b32.xlu0 %v624, 120
        %v651 = vpop.permute.xlu0 %650
        %652 = vrot.lane.b32.xlu0 %v625, 120
        %v653 = vpop.permute.xlu0 %652
        %654 = vrot.lane.b32.xlu0 %v626, 120
        %v655 = vpop.permute.xlu0 %654
        %656 = vrot.lane.b32.xlu0 %v627, 120
        %v657 = vpop.permute.xlu0 %656
        %658 = vrot.lane.b32.xlu0 %v628, 120
        %v659 = vpop.permute.xlu0 %658
        %660 = vrot.lane.b32.xlu0 %v629, 120
        %v661 = vpop.permute.xlu0 %660
        %662 = vrot.lane.b32.xlu0 %v630, 120
        %v663 = vpop.permute.xlu0 %662
        %vm672 = vcmask 257024
        %673 = vst.msk [vmem:[#allocation3] sm:$0xf] %vm672, %v649
        %674 = vst.msk [vmem:[#allocation3 + $0x4] sm:$0xf] %vm672, %v651
        %675 = vst.msk [vmem:[#allocation3 + $0x8] sm:$0xf] %vm672, %v653
        %676 = vst.msk [vmem:[#allocation3 + $0xc] sm:$0xf] %vm672, %v655
        %677 = vst.msk [vmem:[#allocation3 + $0x10] sm:$0xf] %vm672, %v657
        %678 = vst.msk [vmem:[#allocation3 + $0x14] sm:$0xf] %vm672, %v659
        %679 = vst.msk [vmem:[#allocation3 + $0x18] sm:$0xf] %vm672, %v661
        %680 = vst.msk [vmem:[#allocation3 + $0x1c] sm:$0xf] %vm672, %v663
      $region48: #{self_attention_pallas.1} parent=43 // pred_fallthru
        _
      %v681 = vld [vmem:[%s295] sm:$0xff]
      %v682 = vld [vmem:[%s295 + $0x8] sm:$0xff]
      %v683 = vld [vmem:[%s295 + $0x10] sm:$0xff]
      %v684 = vld [vmem:[%s295 + $0x18] sm:$0xff]
      %v685 = vld [vmem:[%s295 + $0x20] sm:$0xff]
      %v686 = vld [vmem:[%s295 + $0x28] sm:$0xff]
      %v687 = vld [vmem:[%s295 + $0x30] sm:$0xff]
      %v688 = vld [vmem:[%s295 + $0x38] sm:$0xff]
      %v689 = vpack.c.bf16 %v682, %v681
      %v690 = vpack.c.bf16 %v684, %v683
      %v691 = vpack.c.bf16 %v686, %v685
      %v692 = vpack.c.bf16 %v688, %v687
      %v693 = vld [vmem:[%s2] sm:$0xf]
      %v694 = vld [vmem:[%s2 + $0x4] sm:$0xf]
      %v695 = vld [vmem:[%s2 + $0x8] sm:$0xf]
      %v696 = vld [vmem:[%s2 + $0xc] sm:$0xf]
      %v697 = vld [vmem:[%s2 + $0x10] sm:$0xf]
      %v698 = vld [vmem:[%s2 + $0x14] sm:$0xf]
      %v699 = vld [vmem:[%s2 + $0x18] sm:$0xf]
      %v700 = vld [vmem:[%s2 + $0x1c] sm:$0xf]
      %v709 = vunpack.c.l.b16 %v693
      %v710 = vunpack.c.l.b16 %v694
      %v711 = vunpack.c.l.b16 %v695
      %v712 = vunpack.c.l.b16 %v696
      %v713 = vunpack.c.l.b16 %v697
      %v714 = vunpack.c.l.b16 %v698
      %v715 = vunpack.c.l.b16 %v699
      %v716 = vunpack.c.l.b16 %v700
      %v717 = vpack.c.b16 %v710, %v709
      %v718 = vpack.c.b16 %v712, %v711
      %v719 = vpack.c.b16 %v714, %v713
      %v720 = vpack.c.b16 %v716, %v715
      %vm725 = vcmask 523264
      %v727 = vsel %vm725, %v689, 0
      %v730 = vsel %vm725, %v690, 0
      %v733 = vsel %vm725, %v691, 0
      %v736 = vsel %vm725, %v692, 0
      %738 = vmatpush.bf16.msra.mxu0 0
      %739 = vmatpush.bf16.msra.mxu0 0
      %740 = vmatpush.bf16.msra.mxu0 0
      %741 = vmatpush.bf16.msra.mxu0 0
      %742 = vmatpush.bf16.msra.mxu0 %v720
      %743 = vmatpush.bf16.msra.mxu0 %v719
      %744 = vmatpush.bf16.msra.mxu0 %v718
      %745 = vmatpush.bf16.msra.mxu0 %v717
      %746 = vmatmul.bf16.gmra.mxu0 %v727
      %v747 = vpop.f32.mrf.mxu0
      %v748 = vadd.f32 0.0, %v747
      %v749 = vpop.f32.mrf.mxu0
      %v750 = vadd.f32 0.0, %v749
      %751 = vmatmul.bf16.gmra.mxu0 %v730
      %v752 = vpop.f32.mrf.mxu0
      %v753 = vadd.f32 0.0, %v752
      %v754 = vpop.f32.mrf.mxu0
      %v755 = vadd.f32 0.0, %v754
      %756 = vmatmul.bf16.gmra.mxu0 %v733
      %v757 = vpop.f32.mrf.mxu0
      %v758 = vadd.f32 0.0, %v757
      %v759 = vpop.f32.mrf.mxu0
      %v760 = vadd.f32 0.0, %v759
      %761 = vmatmul.bf16.gmra.mxu0 %v736
      %v762 = vpop.f32.mrf.mxu0
      %v763 = vadd.f32 0.0, %v762
      %v764 = vpop.f32.mrf.mxu0
      %v765 = vadd.f32 0.0, %v764
      %766 = vdwg.mxu0
      %v767 = vpack.c.bf16 %v750, %v748
      %v768 = vpack.c.bf16 %v755, %v753
      %v769 = vpack.c.bf16 %v760, %v758
      %v770 = vpack.c.bf16 %v765, %v763
      %v771 = vld [vmem:[#allocation2] sm:$0xf]
      %v772 = vld [vmem:[#allocation2 + $0x4] sm:$0xf]
      %v773 = vld [vmem:[#allocation2 + $0x8] sm:$0xf]
      %v774 = vld [vmem:[#allocation2 + $0xc] sm:$0xf]
      %v775 = vld [vmem:[#allocation2 + $0x10] sm:$0xf]
      %v776 = vld [vmem:[#allocation2 + $0x14] sm:$0xf]
      %v777 = vld [vmem:[#allocation2 + $0x18] sm:$0xf]
      %v778 = vld [vmem:[#allocation2 + $0x1c] sm:$0xf]
      %v787 = vunpack.c.l.b16 %v771
      %v788 = vunpack.c.l.b16 %v772
      %v789 = vunpack.c.l.b16 %v773
      %v790 = vunpack.c.l.b16 %v774
      %v791 = vunpack.c.l.b16 %v775
      %v792 = vunpack.c.l.b16 %v776
      %v793 = vunpack.c.l.b16 %v777
      %v794 = vunpack.c.l.b16 %v778
      %v795 = vpack.c.b16 %v788, %v787
      %v796 = vpack.c.b16 %v790, %v789
      %v797 = vpack.c.b16 %v792, %v791
      %v798 = vpack.c.b16 %v794, %v793
      %vm799 = vcmask 64512
      %v801 = vsel %vm799, %v767, 0
      %v804 = vsel %vm799, %v768, 0
      %v807 = vsel %vm799, %v769, 0
      %v810 = vsel %vm799, %v770, 0
      %v813 = vsel %vm799, %v795, 0
      %v816 = vsel %vm799, %v796, 0
      %v819 = vsel %vm799, %v797, 0
      %v822 = vsel %vm799, %v798, 0
      %824 = vmatpush.bf16.xpose.msra.mxu0 0
      %825 = vmatpush.bf16.xpose.msra.mxu0 0
      %826 = vmatpush.bf16.xpose.msra.mxu0 0
      %827 = vmatpush.bf16.xpose.msra.mxu0 0
      %828 = vmatpush.bf16.xpose.msra.mxu0 %v822
      %829 = vmatpush.bf16.xpose.msra.mxu0 %v819
      %830 = vmatpush.bf16.xpose.msra.mxu0 %v816
      %831 = vmatpush.bf16.xpose.msra.mxu0 %v813
      %832 = vmatmul.bf16.gmra.mxu0 %v801
      %v833 = vpop.f32.mrf.mxu0
      %v834 = vadd.f32 0.0, %v833
      %v835 = vpop.f32.mrf.mxu0
      %v836 = vadd.f32 0.0, %v835
      %837 = vmatmul.bf16.gmra.mxu0 %v804
      %v838 = vpop.f32.mrf.mxu0
      %v839 = vadd.f32 0.0, %v838
      %v840 = vpop.f32.mrf.mxu0
      %v841 = vadd.f32 0.0, %v840
      %842 = vmatmul.bf16.gmra.mxu0 %v807
      %v843 = vpop.f32.mrf.mxu0
      %v844 = vadd.f32 0.0, %v843
      %v845 = vpop.f32.mrf.mxu0
      %v846 = vadd.f32 0.0, %v845
      %847 = vmatmul.bf16.gmra.mxu0 %v810
      %v848 = vpop.f32.mrf.mxu0
      %v849 = vadd.f32 0.0, %v848
      %v850 = vpop.f32.mrf.mxu0
      %v851 = vadd.f32 0.0, %v850
      %852 = vdwg.mxu0
      %v853 = vsel %vm725, %v834, -inf
      %854 = vmax.xlane.f32.xlu0 %v853
      %v855 = vpop.xlane.xlu0 %854
      %v856 = vsel %vm725, %v836, -inf
      %857 = vmax.xlane.f32.xlu0 %v856
      %v858 = vpop.xlane.xlu0 %857
      %v859 = vsel %vm725, %v839, -inf
      %860 = vmax.xlane.f32.xlu0 %v859
      %v861 = vpop.xlane.xlu0 %860
      %v862 = vsel %vm725, %v841, -inf
      %863 = vmax.xlane.f32.xlu0 %v862
      %v864 = vpop.xlane.xlu0 %863
      %v865 = vsel %vm725, %v844, -inf
      %866 = vmax.xlane.f32.xlu0 %v865
      %v867 = vpop.xlane.xlu0 %866
      %v868 = vsel %vm725, %v846, -inf
      %869 = vmax.xlane.f32.xlu0 %v868
      %v870 = vpop.xlane.xlu0 %869
      %v871 = vsel %vm725, %v849, -inf
      %872 = vmax.xlane.f32.xlu0 %v871
      %v873 = vpop.xlane.xlu0 %872
      %v874 = vsel %vm725, %v851, -inf
      %875 = vmax.xlane.f32.xlu0 %v874
      %v876 = vpop.xlane.xlu0 %875
      %v877 = vsub.f32 %v834, %v855
      %v878 = vsub.f32 %v836, %v858
      %v879 = vsub.f32 %v839, %v861
      %v880 = vsub.f32 %v841, %v864
      %v881 = vsub.f32 %v844, %v867
      %v882 = vsub.f32 %v846, %v870
      %v883 = vsub.f32 %v849, %v873
      %v884 = vsub.f32 %v851, %v876
      %v885 = vmul.f32 %v877, 1.442695
      %v886 = vpow.pop %v885
      %v887 = vmul.f32 %v878, 1.442695
      %v888 = vpow.pop %v887
      %v889 = vmul.f32 %v879, 1.442695
      %v890 = vpow.pop %v889
      %v891 = vmul.f32 %v880, 1.442695
      %v892 = vpow.pop %v891
      %v893 = vmul.f32 %v881, 1.442695
      %v894 = vpow.pop %v893
      %v895 = vmul.f32 %v882, 1.442695
      %v896 = vpow.pop %v895
      %v897 = vmul.f32 %v883, 1.442695
      %v898 = vpow.pop %v897
      %v899 = vmul.f32 %v884, 1.442695
      %v900 = vpow.pop %v899
      %v901 = vsel %vm725, %v886, 0.0
      %902 = vadd.xlane.f32.xlu0 %v901
      %v903 = vpop.xlane.xlu0 %902
      %v904 = vsel %vm725, %v888, 0.0
      %905 = vadd.xlane.f32.xlu0 %v904
      %v906 = vpop.xlane.xlu0 %905
      %v907 = vsel %vm725, %v890, 0.0
      %908 = vadd.xlane.f32.xlu0 %v907
      %v909 = vpop.xlane.xlu0 %908
      %v910 = vsel %vm725, %v892, 0.0
      %911 = vadd.xlane.f32.xlu0 %v910
      %v912 = vpop.xlane.xlu0 %911
      %v913 = vsel %vm725, %v894, 0.0
      %914 = vadd.xlane.f32.xlu0 %v913
      %v915 = vpop.xlane.xlu0 %914
      %v916 = vsel %vm725, %v896, 0.0
      %917 = vadd.xlane.f32.xlu0 %v916
      %v918 = vpop.xlane.xlu0 %917
      %v919 = vsel %vm725, %v898, 0.0
      %920 = vadd.xlane.f32.xlu0 %v919
      %v921 = vpop.xlane.xlu0 %920
      %v922 = vsel %vm725, %v900, 0.0
      %923 = vadd.xlane.f32.xlu0 %v922
      %v924 = vpop.xlane.xlu0 %923
      %v925 = vpack.c.bf16 %v888, %v886
      %v926 = vpack.c.bf16 %v892, %v890
      %v927 = vpack.c.bf16 %v896, %v894
      %v928 = vpack.c.bf16 %v900, %v898
      %v929 = vld [vmem:[#allocation3] sm:$0xf]
      %v930 = vld [vmem:[#allocation3 + $0x4] sm:$0xf]
      %v931 = vld [vmem:[#allocation3 + $0x8] sm:$0xf]
      %v932 = vld [vmem:[#allocation3 + $0xc] sm:$0xf]
      %v933 = vld [vmem:[#allocation3 + $0x10] sm:$0xf]
      %v934 = vld [vmem:[#allocation3 + $0x14] sm:$0xf]
      %v935 = vld [vmem:[#allocation3 + $0x18] sm:$0xf]
      %v936 = vld [vmem:[#allocation3 + $0x1c] sm:$0xf]
      %v945 = vunpack.c.l.b16 %v929
      %v946 = vunpack.c.l.b16 %v930
      %v947 = vunpack.c.l.b16 %v931
      %v948 = vunpack.c.l.b16 %v932
      %v949 = vunpack.c.l.b16 %v933
      %v950 = vunpack.c.l.b16 %v934
      %v951 = vunpack.c.l.b16 %v935
      %v952 = vunpack.c.l.b16 %v936
      %v953 = vpack.c.b16 %v946, %v945
      %v954 = vpack.c.b16 %v948, %v947
      %v955 = vpack.c.b16 %v950, %v949
      %v956 = vpack.c.b16 %v952, %v951
      %v962 = vsel %vm725, %v925, 0
      %v965 = vsel %vm725, %v926, 0
      %v968 = vsel %vm725, %v927, 0
      %v971 = vsel %vm725, %v928, 0
      %973 = vmatpush.bf16.msra.mxu0 0
      %974 = vmatpush.bf16.msra.mxu0 0
      %975 = vmatpush.bf16.msra.mxu0 0
      %976 = vmatpush.bf16.msra.mxu0 0
      %977 = vmatpush.bf16.msra.mxu0 %v956
      %978 = vmatpush.bf16.msra.mxu0 %v955
      %979 = vmatpush.bf16.msra.mxu0 %v954
      %980 = vmatpush.bf16.msra.mxu0 %v953
      %981 = vmatmul.bf16.gmra.mxu0 %v962
      %v982 = vpop.f32.mrf.mxu0
      %v983 = vadd.f32 0.0, %v982
      %v984 = vpop.f32.mrf.mxu0
      %v985 = vadd.f32 0.0, %v984
      %986 = vmatmul.bf16.gmra.mxu0 %v965
      %v987 = vpop.f32.mrf.mxu0
      %v988 = vadd.f32 0.0, %v987
      %v989 = vpop.f32.mrf.mxu0
      %v990 = vadd.f32 0.0, %v989
      %991 = vmatmul.bf16.gmra.mxu0 %v968
      %v992 = vpop.f32.mrf.mxu0
      %v993 = vadd.f32 0.0, %v992
      %v994 = vpop.f32.mrf.mxu0
      %v995 = vadd.f32 0.0, %v994
      %996 = vmatmul.bf16.gmra.mxu0 %v971
      %v997 = vpop.f32.mrf.mxu0
      %v998 = vadd.f32 0.0, %v997
      %v999 = vpop.f32.mrf.mxu0
      %v1000 = vadd.f32 0.0, %v999
      %1001 = vdwg.mxu0
      %s1002 = sld [smem:[#allocation4]]
      %v1003 = vrcp.pop %v903
      %v1004 = vrcp.pop %v906
      %v1005 = vrcp.pop %v909
      %v1006 = vrcp.pop %v912
      %v1007 = vrcp.pop %v915
      %v1008 = vrcp.pop %v918
      %v1009 = vrcp.pop %v921
      %v1010 = vrcp.pop %v924
      %v1011 = vstv %s1002
      %v1012 = vmul.f32 %v1011, %v1003
      %v1013 = vmul.f32 %v1011, %v1004
      %v1014 = vmul.f32 %v1011, %v1005
      %v1015 = vmul.f32 %v1011, %v1006
      %v1016 = vmul.f32 %v1011, %v1007
      %v1017 = vmul.f32 %v1011, %v1008
      %v1018 = vmul.f32 %v1011, %v1009
      %v1019 = vmul.f32 %v1011, %v1010
      %v1020 = vmul.f32 %v983, %v1012
      %v1021 = vmul.f32 %v985, %v1013
      %v1022 = vmul.f32 %v988, %v1014
      %v1023 = vmul.f32 %v990, %v1015
      %v1024 = vmul.f32 %v993, %v1016
      %v1025 = vmul.f32 %v995, %v1017
      %v1026 = vmul.f32 %v998, %v1018
      %v1027 = vmul.f32 %v1000, %v1019
      %v1028 = vpack.c.bf16 %v1021, %v1020
      %v1029 = vpack.c.bf16 %v1023, %v1022
      %v1030 = vpack.c.bf16 %v1025, %v1024
      %v1031 = vpack.c.bf16 %v1027, %v1026
      %v1032 = vld [vmem:[%s4] sm:$0xf]
      %v1033 = vld [vmem:[%s4 + $0x4] sm:$0xf]
      %v1034 = vld [vmem:[%s4 + $0x8] sm:$0xf]
      %v1035 = vld [vmem:[%s4 + $0xc] sm:$0xf]
      %v1040 = vunpack.c.l.b16 %v1032
      %v1041 = vunpack.c.l.b16 %v1033
      %v1042 = vunpack.c.l.b16 %v1034
      %v1043 = vunpack.c.l.b16 %v1035
      %v1044 = vpack.c.b16 %v1041, %v1040
      %v1045 = vpack.c.b16 %v1043, %v1042
      %vm1048 = vcmask 261120
      %v1050 = vsel %vm1048, %v1028, 0
      %v1053 = vsel %vm1048, %v1029, 0
      %v1056 = vsel %vm1048, %v1030, 0
      %v1059 = vsel %vm1048, %v1031, 0
      %1061 = vmatpush.bf16.msra.mxu0 0
      %1062 = vmatpush.bf16.msra.mxu0 0
      %1063 = vmatpush.bf16.msra.mxu0 0
      %1064 = vmatpush.bf16.msra.mxu0 0
      %1065 = vmatpush.bf16.msra.mxu0 0
      %1066 = vmatpush.bf16.msra.mxu0 0
      %1067 = vmatpush.bf16.msra.mxu0 %v1045
      %1068 = vmatpush.bf16.msra.mxu0 %v1044
      %1069 = vmatmul.bf16.gmra.mxu0 %v1050
      %v1070 = vpop.f32.mrf.mxu0
      %v1071 = vadd.f32 %v681, %v1070
      %v1072 = vpop.f32.mrf.mxu0
      %v1073 = vadd.f32 %v682, %v1072
      %1074 = vmatmul.bf16.gmra.mxu0 %v1053
      %v1075 = vpop.f32.mrf.mxu0
      %v1076 = vadd.f32 %v683, %v1075
      %v1077 = vpop.f32.mrf.mxu0
      %v1078 = vadd.f32 %v684, %v1077
      %1079 = vmatmul.bf16.gmra.mxu0 %v1056
      %v1080 = vpop.f32.mrf.mxu0
      %v1081 = vadd.f32 %v685, %v1080
      %v1082 = vpop.f32.mrf.mxu0
      %v1083 = vadd.f32 %v686, %v1082
      %1084 = vmatmul.bf16.gmra.mxu0 %v1059
      %v1085 = vpop.f32.mrf.mxu0
      %v1086 = vadd.f32 %v687, %v1085
      %v1087 = vpop.f32.mrf.mxu0
      %v1088 = vadd.f32 %v688, %v1087
      %1089 = vdwg.mxu0
      %1090 = vst.msk [vmem:[%s310] sm:$0xff] %vm725, %v1071
      %1091 = vst.msk [vmem:[%s310 + $0x8] sm:$0xff] %vm725, %v1073
      %1092 = vst.msk [vmem:[%s310 + $0x10] sm:$0xff] %vm725, %v1076
      %1093 = vst.msk [vmem:[%s310 + $0x18] sm:$0xff] %vm725, %v1078
      %1094 = vst.msk [vmem:[%s310 + $0x20] sm:$0xff] %vm725, %v1081
      %1095 = vst.msk [vmem:[%s310 + $0x28] sm:$0xff] %vm725, %v1083
      %1096 = vst.msk [vmem:[%s310 + $0x30] sm:$0xff] %vm725, %v1086
      %1097 = vst.msk [vmem:[%s310 + $0x38] sm:$0xff] %vm725, %v1088
      %s1098 = smul.u32 8, %s23
      %p1099 = scmp.lt.s32.totalorder %s22, 1
      %s1100 = scalar_select %p1099, %s22, 1
      %p1101 = scmp.lt.s32.totalorder %s1098, 31
      %s1102 = scalar_select %p1101, %s1098, 31
      %s1103 = smul.addr %s1100, 32
      %s1104 = sadd.s32 %s1102, %s1103
      %s1105 = smul.addr %s1104, 8
      %s1106 = scalar_lea.vmem %s6, %s1105
      // Predicated region
      $region49: #{self_attention_pallas.1} parent=43 // pred_check
        %p1107 = pneg %p188
      $region50: #{self_attention_pallas.1} parent=43 // pred_check_branch
        %1109 = sbr.rel (%p1107) target = $region52
      $region51: #{self_attention_pallas.1} parent=43 // pred_region
        %s1110 = smul.u32 8, %s23
      $region52: #{self_attention_pallas.1} parent=43 // pred_fallthru
        _
    $region44: #{self_attention_pallas.1} parent=5 // pred_fallthru
      _
    %p1111 = scmp.le.s32.totalorder 2, %s13
    // Predicated region
    $region53: #{self_attention_pallas.1} parent=5 // pred_check
      %p1112 = pneg %p1111
    $region54: #{self_attention_pallas.1} parent=5 // pred_check_branch
      %1114 = sbr.rel (%p1112) target = $region56
    $region55: #{self_attention_pallas.1} parent=5 // pred_region
      %s1115 = ssub.s32 %s13, 2
      // Predicated region
      $region57: #{self_attention_pallas.1} parent=55 // pred_check
        %p1116 = pneg %p194
      $region58: #{self_attention_pallas.1} parent=55 // pred_check_branch
        %1118 = sbr.rel (%p1116) target = $region60
      $region59: #{self_attention_pallas.1} parent=55 // pred_region
        %s1119 = smul.u32 8, %s25
        %p1120 = scmp.lt.s32.totalorder %s24, 1
        %s1121 = scalar_select %p1120, %s24, 1
        %p1122 = scmp.lt.s32.totalorder %s1119, 31
        %s1123 = scalar_select %p1122, %s1119, 31
        %s1124 = smul.addr %s1121, 32
        %s1125 = sadd.s32 %s1123, %s1124
        %s1126 = smul.addr %s1125, 8
        %s1127 = scalar_lea.vmem %s6, %s1126
      $region60: #{self_attention_pallas.1} parent=55 // pred_fallthru
        _
    $region56: #{self_attention_pallas.1} parent=5 // pred_fallthru
      _
  $region6: #{self_attention_pallas.1} parent=0 // loop_footer
    %s17 = sadd.s32 1, %s13
  $region7: #{self_attention_pallas.1} parent=0 // loop_footer_branch
    %12 = sbr.rel target = $region3
  $region8: #{self_attention_pallas.1} parent=0 // loop_exit
    _

</llo_original>
